<compile_context>
chip_gen: v7x
topology: tpu7x:2x2x1
jax: 0.10.0
libtpu: 0.0.40
codegen_flags: <defaults>
</compile_context>

<pallas_src>
import numpy as np
import jax
import jax.numpy as jnp
from jax import lax
from jax.experimental import pallas as pl
from jax.experimental.pallas import tpu as pltpu

# ------------------------------- configuration --------------------------------
BATCH = 4            # args.batch_size (per-view batch) -> 2B = 8 = one full sublane group
IN_CH = 4            # input channels (C)
SPATIAL = 16         # H = W
HW = SPATIAL * SPATIAL
MLP_DIM = 32         # model.mlp_dim (768 in the real TransUNet)
NUM_CLASSES = 3      # segmentation head width of the synthetic backbone (K)
TEMPERATURE = 0.5    # args.temperature
LOGIT_PAD = 128      # lane-dense padding for the contrastive-logits columns

# packed fc-weight slab layout (rows x 32 lanes)
W1_ROWS = 2 * (IN_CH + 1)      # 10 : [ws_m@w1_m ; b1_m ; ws_e@w1_e ; b1_e]
W2_OFF = 16                    # 8-aligned start of the second block
W2_ROWS = 2 * (MLP_DIM + 1)    # 66 : [w2_m ; b2_m ; w2_e ; b2_e]
SLAB_ROWS = 88                 # 16 + 66, padded to a multiple of 8

# seg-head scalar layout inside the SMEM array (f32)
OFF_WM = 0                           # model wseg_t[k, c] at OFF_WM + k*C + c
OFF_WE = NUM_CLASSES * IN_CH         # ema   wseg_t[k, c]
OFF_BM = 2 * NUM_CLASSES * IN_CH     # model bseg[k]
OFF_BE = OFF_BM + NUM_CLASSES        # ema   bseg[k]
SEG_SCALARS = OFF_BE + NUM_CLASSES   # 30 (padded to 32 on the host)

VMEM = pltpu.MemorySpace.VMEM
SMEM = pltpu.MemorySpace.SMEM


# ================================ fused Pallas kernel ============================
def moclr_fused_kernel(x_ref, w_ref, segs_ref, out_ref):
    """Fused MoCLR forward for both views.

    x_ref    : [C, 2B, HW]        VMEM  channel-first stacked views (view1 = rows 0..B-1)
    w_ref    : [88, D]            VMEM  packed block-diagonal fc weights (biases folded)
    segs_ref : [32]               SMEM  per-branch 1x1-conv seg-head scalars
    out_ref  : [2B, K*HW + 128]   VMEM  [seg planes (lane-dense) | padded contrastive logits]
    """
    c_in = x_ref.shape[0]
    n2 = x_ref.shape[1]            # 2B
    hw = x_ref.shape[2]
    bsz = n2 // 2

    xv = x_ref[...]                               # [C, 2B, HW] -- read from VMEM once
    xp = [xv[c] for c in range(c_in)]             # free leading-dim slices, each [2B, HW]

    # rows < B -> online model (view 1);  rows >= B -> EMA model (view 2)
    row_id = lax.broadcasted_iota(jnp.int32, (n2, 1), 0)
    is_model = row_id < bsz                       # bool [2B, 1]
    mask_m = is_model.astype(jnp.float32)         # [2B, 1]
    mask_e = 1.0 - mask_m

    # ---- 1x1-conv segmentation head: pure-VPU broadcast-FMAs (no MXU) ----------
    seg_planes = []
    for k in range(NUM_CLASSES):                  # K = 3, static
        acc_m = segs_ref[OFF_WM + k * c_in] * xp[0]
        acc_e = segs_ref[OFF_WE + k * c_in] * xp[0]
        for c in range(1, c_in):                  # C = 4, static
            acc_m = acc_m + segs_ref[OFF_WM + k * c_in + c] * xp[c]
            acc_e = acc_e + segs_ref[OFF_WE + k * c_in + c] * xp[c]
        acc_m = acc_m + segs_ref[OFF_BM + k]
        acc_e = acc_e + segs_ref[OFF_BE + k]
        seg_planes.append(jnp.where(is_model, acc_m, acc_e))     # [2B, HW]

    # ---- global average pool over pixels (lane reductions per channel) ---------
    inv_hw = 1.0 / hw
    means = [jnp.sum(xp[c], axis=1, keepdims=True) * inv_hw for c in range(c_in)]
    ones = jnp.ones((n2, 1), jnp.float32)
    aug = jnp.concatenate(means + [ones], axis=1)                # [2B, C+1]

    # ---- projection head: both branches in ONE matmul per layer ----------------
    # block-diagonal trick: rows < B only touch the model weights, rows >= B only
    # the EMA weights; the ones column folds the biases into the matmul.
    blk1 = jnp.concatenate([aug * mask_m, aug * mask_e], axis=1)           # [2B, 2(C+1)]
    h = jnp.dot(blk1, w_ref[0:W1_ROWS, :], preferred_element_type=jnp.float32)
    h = jnp.maximum(h, 0.0)                                                # ReLU
    aug2 = jnp.concatenate([h, ones], axis=1)                              # [2B, D+1]
    blk2 = jnp.concatenate([aug2 * mask_m, aug2 * mask_e], axis=1)         # [2B, 2(D+1)]
    e = jnp.dot(blk2, w_ref[W2_OFF:W2_OFF + W2_ROWS, :],
                preferred_element_type=jnp.float32)                        # [2B, D]

    # ---- embedding = F.normalize(embedding, dim=1), eps = 1e-12 -----------------
    nrm = jnp.sqrt(jnp.sum(e * e, axis=1, keepdims=True))
    f = e / jnp.maximum(nrm, 1e-12)                                        # [2B, D]

    # ---- flat_loss hot path ------------------------------------------------------
    # rows are unit-norm, so plain dot == F.cosine_similarity
    sim = jnp.einsum('id,jd->ij', f, f, preferred_element_type=jnp.float32)  # [2B, 2B]
    partner = jnp.concatenate([f[bsz:], f[:bsz]], axis=0)        # partner[i] = f[(i+B) % 2B]
    pos = jnp.sum(f * partner, axis=1, keepdims=True)            # [2B, 1] positive similarity
    logits = (sim - pos) * (1.0 / TEMPERATURE)                   # [2B, 2B]
    logits_pad = jnp.concatenate(
        [logits, jnp.zeros((n2, LOGIT_PAD - n2), jnp.float32)], axis=1)      # [2B, 128]

    # ---- single lane-dense, unmasked full-tile store of everything --------------
    out_ref[...] = jnp.concatenate(seg_planes + [logits_pad], axis=1)


# =============================== pallas_call wrapper =============================
def run_moclr_fused(x_cf, wslab, seg_scalars):
    _, n2, hw = x_cf.shape
    out_cols = NUM_CLASSES * hw + LOGIT_PAD
    return pl.pallas_call(
        moclr_fused_kernel,
        out_shape=jax.ShapeDtypeStruct((n2, out_cols), jnp.float32),
        in_specs=[pl.BlockSpec(memory_space=VMEM),    # activations  (1 DMA)
                  pl.BlockSpec(memory_space=VMEM),    # packed fc weights (1 DMA)
                  pl.BlockSpec(memory_space=SMEM)],   # seg-head scalars (1 tiny DMA)
        out_specs=pl.BlockSpec(memory_space=VMEM),    # fused output slab (1 DMA)
    )(x_cf, wslab, seg_scalars)


# ================================= parameters ====================================
def init_params(seed=42):
    """Synthetic stand-in for the TransUNet backbone + the fc head MoCLR installs.
    EMA params are exact copies of the model params (as in MoCLR.__init__)."""
    ks = jax.random.split(jax.random.PRNGKey(seed), 6)
    p = {
        "ws":   0.1 * jax.random.normal(ks[0], (IN_CH, MLP_DIM), jnp.float32),
        "w1":   0.1 * jax.random.normal(ks[1], (MLP_DIM, MLP_DIM), jnp.float32),
        "b1":   0.01 * jax.random.normal(ks[2], (1, MLP_DIM), jnp.float32),
        "w2":   0.1 * jax.random.normal(ks[3], (MLP_DIM, MLP_DIM), jnp.float32),
        "b2":   0.01 * jax.random.normal(ks[4], (1, MLP_DIM), jnp.float32),
        "wseg": 0.1 * jax.random.normal(ks[5], (IN_CH, NUM_CLASSES), jnp.float32),
        "bseg": jnp.zeros((1, NUM_CLASSES), jnp.float32),
    }
    p_ema = dict(p)   # parm_2.data.copy_(parm_1.data)
    return p, p_ema


def _fold_branch_fc(p):
    # Stem folded into fc layer 1 (no nonlinearity between them in the synthetic
    # stand-in); biases folded via the ones column.
    w1_aug = jnp.concatenate([jnp.dot(p["ws"], p["w1"]), p["b1"]], axis=0)   # [C+1, D]
    w2_aug = jnp.concatenate([p["w2"], p["b2"]], axis=0)                     # [D+1, D]
    return w1_aug, w2_aug


def fold_params(p_model, p_ema):
    """Pack everything the kernel needs into one VMEM slab + one SMEM scalar array."""
    w1m, w2m = _fold_branch_fc(p_model)
    w1e, w2e = _fold_branch_fc(p_ema)
    slab = jnp.zeros((SLAB_ROWS, MLP_DIM), jnp.float32)
    slab = slab.at[0:W1_ROWS].set(jnp.concatenate([w1m, w1e], axis=0))
    slab = slab.at[W2_OFF:W2_OFF + W2_ROWS].set(jnp.concatenate([w2m, w2e], axis=0))
    seg = jnp.concatenate([
        p_model["wseg"].T.reshape(-1),   # [K*C] model 1x1-conv weight (k-major)
        p_ema["wseg"].T.reshape(-1),     # [K*C] ema
        p_model["bseg"].reshape(-1),     # [K]
        p_ema["bseg"].reshape(-1),       # [K]
        jnp.zeros((2,), jnp.float32),    # pad 30 -> 32 scalars
    ])
    return {"wslab": slab, "seg_scalars": seg}


# ================================= MoCLR forward =================================
def flat_loss_index_glue(n, bsz):
    """Static index table reproducing the PyTorch masking order:
    row i keeps columns j != i and j != (i+bsz) % n, in increasing j order."""
    neg_idx = np.zeros((n, n - 2), dtype=np.int32)
    for i in range(n):
        pos = (i + bsz) % n
        neg_idx[i] = [j for j in range(n) if j != i and j != pos]
    return jnp.asarray(neg_idx)


def moclr_forward(x1, x2, prep):
    b, c, h, w = x1.shape
    n2 = 2 * b
    hw = h * w
    # Pre-stack both views and go channel-first: a single tiny (32 KiB) host
    # relayout so the kernel sees dense [2B, HW] channel planes (layout plumbing,
    # not compute hoisting); one activation DMA instead of two.
    x_all = jnp.concatenate([x1.reshape(b, c, hw), x2.reshape(b, c, hw)], axis=0)
    x_cf = jnp.transpose(x_all, (1, 0, 2))                      # [C, 2B, HW]

    out = run_moclr_fused(x_cf, prep["wslab"], prep["seg_scalars"])

    seg = out[:, :NUM_CLASSES * hw].reshape(n2, NUM_CLASSES, h, w)   # free reshape to NCHW
    outputs, ema_outputs = seg[:b], seg[b:]

    logits_pad = out[:, NUM_CLASSES * hw:]                      # [2B, 128]
    # Drop diagonal + positive column (tiny static gather; move in-kernel only if 2B grows).
    neg_idx = flat_loss_index_glue(n2, b)
    logits = jnp.take_along_axis(logits_pad[:, :n2], neg_idx, axis=1)    # [2B, 2B-2]
    labels = jnp.zeros((n2,), dtype=jnp.int32)
    # TODO(synk): autocast(fp16) / .cuda() placement have no Pallas equivalent; f32 here.
    return logits, labels, outputs, ema_outputs


# ===================================== main ======================================
if __name__ == "__main__":
    key = jax.random.PRNGKey(0)
    k1, k2 = jax.random.split(key)
    x1 = jax.random.normal(k1, (BATCH, IN_CH, SPATIAL, SPATIAL), jnp.float32)
    x2 = jax.random.normal(k2, (BATCH, IN_CH, SPATIAL, SPATIAL), jnp.float32)

    p_model, p_ema = init_params()
    prep = fold_params(p_model, p_ema)

    fwd = jax.jit(moclr_forward)
    logits, labels, outputs, ema_outputs = fwd(x1, x2, prep)
    jax.block_until_ready((logits, labels, outputs, ema_outputs))

    assert logits.shape == (2 * BATCH, 2 * BATCH - 2)
    assert labels.shape == (2 * BATCH,)
    assert outputs.shape == (BATCH, NUM_CLASSES, SPATIAL, SPATIAL)
    assert ema_outputs.shape == (BATCH, NUM_CLASSES, SPATIAL, SPATIAL)
    assert bool(jnp.all(jnp.isfinite(logits)))
    print("KERNEL_OK")
</pallas_src>

<mosaic_0001>
module attributes {stable_mosaic.version = 11 : i64} {
  func.func @moclr_fused_kernel(%arg0: memref<4x8x256xf32, #tpu.memory_space<vmem>>, %arg1: memref<88x32xf32, #tpu.memory_space<vmem>>, %arg2: memref<32xf32, #tpu.memory_space<smem>>, %arg3: memref<8x896xf32, #tpu.memory_space<vmem>>) attributes {dimension_semantics = [], scalar_prefetch = 0 : i64, scratch_operands = 0 : i64, tpu.core_type = #tpu.core_type<tc>} {
    %c0 = arith.constant 0 : index
    %c0_0 = arith.constant 0 : index
    %c0_1 = arith.constant 0 : index
    %0 = vector.load %arg0[%c0, %c0_0, %c0_1] : memref<4x8x256xf32, #tpu.memory_space<vmem>>, vector<4x8x256xf32>
    %1 = vector.extract_strided_slice %0 {offsets = [0, 0, 0], sizes = [1, 8, 256], strides = [1, 1, 1]} : vector<4x8x256xf32> to vector<1x8x256xf32>
    %2 = vector.shape_cast %1 : vector<1x8x256xf32> to vector<8x256xf32>
    %3 = vector.extract_strided_slice %0 {offsets = [1, 0, 0], sizes = [1, 8, 256], strides = [1, 1, 1]} : vector<4x8x256xf32> to vector<1x8x256xf32>
    %4 = vector.shape_cast %3 : vector<1x8x256xf32> to vector<8x256xf32>
    %5 = vector.extract_strided_slice %0 {offsets = [2, 0, 0], sizes = [1, 8, 256], strides = [1, 1, 1]} : vector<4x8x256xf32> to vector<1x8x256xf32>
    %6 = vector.shape_cast %5 : vector<1x8x256xf32> to vector<8x256xf32>
    %7 = vector.extract_strided_slice %0 {offsets = [3, 0, 0], sizes = [1, 8, 256], strides = [1, 1, 1]} : vector<4x8x256xf32> to vector<1x8x256xf32>
    %8 = vector.shape_cast %7 : vector<1x8x256xf32> to vector<8x256xf32>
    %9 = tpu.iota {dimensions = array<i32: 0>} : vector<8x1xi32>
    %c4_i32 = arith.constant 4 : i32
    %10 = vector.broadcast %c4_i32 : i32 to vector<8x1xi32>
    %11 = arith.cmpi slt, %9, %10 : vector<8x1xi32>
    %12 = arith.extui %11 : vector<8x1xi1> to vector<8x1xi32>
    %13 = arith.sitofp %12 : vector<8x1xi32> to vector<8x1xf32>
    %cst = arith.constant 1.000000e+00 : f32
    %14 = vector.broadcast %cst : f32 to vector<8x1xf32>
    %15 = arith.subf %14, %13 : vector<8x1xf32>
    %c0_2 = arith.constant 0 : index
    %16 = memref.load %arg2[%c0_2] : memref<32xf32, #tpu.memory_space<smem>>
    %17 = vector.broadcast %16 : f32 to vector<8x256xf32>
    %18 = arith.mulf %17, %2 : vector<8x256xf32>
    %c12 = arith.constant 12 : index
    %19 = memref.load %arg2[%c12] : memref<32xf32, #tpu.memory_space<smem>>
    %20 = vector.broadcast %19 : f32 to vector<8x256xf32>
    %21 = arith.mulf %20, %2 : vector<8x256xf32>
    %c1 = arith.constant 1 : index
    %22 = memref.load %arg2[%c1] : memref<32xf32, #tpu.memory_space<smem>>
    %23 = vector.broadcast %22 : f32 to vector<8x256xf32>
    %24 = arith.mulf %23, %4 : vector<8x256xf32>
    %25 = arith.addf %18, %24 : vector<8x256xf32>
    %c13 = arith.constant 13 : index
    %26 = memref.load %arg2[%c13] : memref<32xf32, #tpu.memory_space<smem>>
    %27 = vector.broadcast %26 : f32 to vector<8x256xf32>
    %28 = arith.mulf %27, %4 : vector<8x256xf32>
    %29 = arith.addf %21, %28 : vector<8x256xf32>
    %c2 = arith.constant 2 : index
    %30 = memref.load %arg2[%c2] : memref<32xf32, #tpu.memory_space<smem>>
    %31 = vector.broadcast %30 : f32 to vector<8x256xf32>
    %32 = arith.mulf %31, %6 : vector<8x256xf32>
    %33 = arith.addf %25, %32 : vector<8x256xf32>
    %c14 = arith.constant 14 : index
    %34 = memref.load %arg2[%c14] : memref<32xf32, #tpu.memory_space<smem>>
    %35 = vector.broadcast %34 : f32 to vector<8x256xf32>
    %36 = arith.mulf %35, %6 : vector<8x256xf32>
    %37 = arith.addf %29, %36 : vector<8x256xf32>
    %c3 = arith.constant 3 : index
    %38 = memref.load %arg2[%c3] : memref<32xf32, #tpu.memory_space<smem>>
    %39 = vector.broadcast %38 : f32 to vector<8x256xf32>
    %40 = arith.mulf %39, %8 : vector<8x256xf32>
    %41 = arith.addf %33, %40 : vector<8x256xf32>
    %c15 = arith.constant 15 : index
    %42 = memref.load %arg2[%c15] : memref<32xf32, #tpu.memory_space<smem>>
    %43 = vector.broadcast %42 : f32 to vector<8x256xf32>
    %44 = arith.mulf %43, %8 : vector<8x256xf32>
    %45 = arith.addf %37, %44 : vector<8x256xf32>
    %c24 = arith.constant 24 : index
    %46 = memref.load %arg2[%c24] : memref<32xf32, #tpu.memory_space<smem>>
    %47 = vector.broadcast %46 : f32 to vector<8x256xf32>
    %48 = arith.addf %41, %47 : vector<8x256xf32>
    %c27 = arith.constant 27 : index
    %49 = memref.load %arg2[%c27] : memref<32xf32, #tpu.memory_space<smem>>
    %50 = vector.broadcast %49 : f32 to vector<8x256xf32>
    %51 = arith.addf %45, %50 : vector<8x256xf32>
    %52 = vector.shape_cast %11 : vector<8x1xi1> to vector<8x1xi1>
    %53 = vector.broadcast %52 : vector<8x1xi1> to vector<8x256xi1>
    %54 = arith.select %53, %48, %51 : vector<8x256xi1>, vector<8x256xf32>
    %c4 = arith.constant 4 : index
    %55 = memref.load %arg2[%c4] : memref<32xf32, #tpu.memory_space<smem>>
    %56 = vector.broadcast %55 : f32 to vector<8x256xf32>
    %57 = arith.mulf %56, %2 : vector<8x256xf32>
    %c16 = arith.constant 16 : index
    %58 = memref.load %arg2[%c16] : memref<32xf32, #tpu.memory_space<smem>>
    %59 = vector.broadcast %58 : f32 to vector<8x256xf32>
    %60 = arith.mulf %59, %2 : vector<8x256xf32>
    %c5 = arith.constant 5 : index
    %61 = memref.load %arg2[%c5] : memref<32xf32, #tpu.memory_space<smem>>
    %62 = vector.broadcast %61 : f32 to vector<8x256xf32>
    %63 = arith.mulf %62, %4 : vector<8x256xf32>
    %64 = arith.addf %57, %63 : vector<8x256xf32>
    %c17 = arith.constant 17 : index
    %65 = memref.load %arg2[%c17] : memref<32xf32, #tpu.memory_space<smem>>
    %66 = vector.broadcast %65 : f32 to vector<8x256xf32>
    %67 = arith.mulf %66, %4 : vector<8x256xf32>
    %68 = arith.addf %60, %67 : vector<8x256xf32>
    %c6 = arith.constant 6 : index
    %69 = memref.load %arg2[%c6] : memref<32xf32, #tpu.memory_space<smem>>
    %70 = vector.broadcast %69 : f32 to vector<8x256xf32>
    %71 = arith.mulf %70, %6 : vector<8x256xf32>
    %72 = arith.addf %64, %71 : vector<8x256xf32>
    %c18 = arith.constant 18 : index
    %73 = memref.load %arg2[%c18] : memref<32xf32, #tpu.memory_space<smem>>
    %74 = vector.broadcast %73 : f32 to vector<8x256xf32>
    %75 = arith.mulf %74, %6 : vector<8x256xf32>
    %76 = arith.addf %68, %75 : vector<8x256xf32>
    %c7 = arith.constant 7 : index
    %77 = memref.load %arg2[%c7] : memref<32xf32, #tpu.memory_space<smem>>
    %78 = vector.broadcast %77 : f32 to vector<8x256xf32>
    %79 = arith.mulf %78, %8 : vector<8x256xf32>
    %80 = arith.addf %72, %79 : vector<8x256xf32>
    %c19 = arith.constant 19 : index
    %81 = memref.load %arg2[%c19] : memref<32xf32, #tpu.memory_space<smem>>
    %82 = vector.broadcast %81 : f32 to vector<8x256xf32>
    %83 = arith.mulf %82, %8 : vector<8x256xf32>
    %84 = arith.addf %76, %83 : vector<8x256xf32>
    %c25 = arith.constant 25 : index
    %85 = memref.load %arg2[%c25] : memref<32xf32, #tpu.memory_space<smem>>
    %86 = vector.broadcast %85 : f32 to vector<8x256xf32>
    %87 = arith.addf %80, %86 : vector<8x256xf32>
    %c28 = arith.constant 28 : index
    %88 = memref.load %arg2[%c28] : memref<32xf32, #tpu.memory_space<smem>>
    %89 = vector.broadcast %88 : f32 to vector<8x256xf32>
    %90 = arith.addf %84, %89 : vector<8x256xf32>
    %91 = vector.shape_cast %11 : vector<8x1xi1> to vector<8x1xi1>
    %92 = vector.broadcast %91 : vector<8x1xi1> to vector<8x256xi1>
    %93 = arith.select %92, %87, %90 : vector<8x256xi1>, vector<8x256xf32>
    %c8 = arith.constant 8 : index
    %94 = memref.load %arg2[%c8] : memref<32xf32, #tpu.memory_space<smem>>
    %95 = vector.broadcast %94 : f32 to vector<8x256xf32>
    %96 = arith.mulf %95, %2 : vector<8x256xf32>
    %c20 = arith.constant 20 : index
    %97 = memref.load %arg2[%c20] : memref<32xf32, #tpu.memory_space<smem>>
    %98 = vector.broadcast %97 : f32 to vector<8x256xf32>
    %99 = arith.mulf %98, %2 : vector<8x256xf32>
    %c9 = arith.constant 9 : index
    %100 = memref.load %arg2[%c9] : memref<32xf32, #tpu.memory_space<smem>>
    %101 = vector.broadcast %100 : f32 to vector<8x256xf32>
    %102 = arith.mulf %101, %4 : vector<8x256xf32>
    %103 = arith.addf %96, %102 : vector<8x256xf32>
    %c21 = arith.constant 21 : index
    %104 = memref.load %arg2[%c21] : memref<32xf32, #tpu.memory_space<smem>>
    %105 = vector.broadcast %104 : f32 to vector<8x256xf32>
    %106 = arith.mulf %105, %4 : vector<8x256xf32>
    %107 = arith.addf %99, %106 : vector<8x256xf32>
    %c10 = arith.constant 10 : index
    %108 = memref.load %arg2[%c10] : memref<32xf32, #tpu.memory_space<smem>>
    %109 = vector.broadcast %108 : f32 to vector<8x256xf32>
    %110 = arith.mulf %109, %6 : vector<8x256xf32>
    %111 = arith.addf %103, %110 : vector<8x256xf32>
    %c22 = arith.constant 22 : index
    %112 = memref.load %arg2[%c22] : memref<32xf32, #tpu.memory_space<smem>>
    %113 = vector.broadcast %112 : f32 to vector<8x256xf32>
    %114 = arith.mulf %113, %6 : vector<8x256xf32>
    %115 = arith.addf %107, %114 : vector<8x256xf32>
    %c11 = arith.constant 11 : index
    %116 = memref.load %arg2[%c11] : memref<32xf32, #tpu.memory_space<smem>>
    %117 = vector.broadcast %116 : f32 to vector<8x256xf32>
    %118 = arith.mulf %117, %8 : vector<8x256xf32>
    %119 = arith.addf %111, %118 : vector<8x256xf32>
    %c23 = arith.constant 23 : index
    %120 = memref.load %arg2[%c23] : memref<32xf32, #tpu.memory_space<smem>>
    %121 = vector.broadcast %120 : f32 to vector<8x256xf32>
    %122 = arith.mulf %121, %8 : vector<8x256xf32>
    %123 = arith.addf %115, %122 : vector<8x256xf32>
    %c26 = arith.constant 26 : index
    %124 = memref.load %arg2[%c26] : memref<32xf32, #tpu.memory_space<smem>>
    %125 = vector.broadcast %124 : f32 to vector<8x256xf32>
    %126 = arith.addf %119, %125 : vector<8x256xf32>
    %c29 = arith.constant 29 : index
    %127 = memref.load %arg2[%c29] : memref<32xf32, #tpu.memory_space<smem>>
    %128 = vector.broadcast %127 : f32 to vector<8x256xf32>
    %129 = arith.addf %123, %128 : vector<8x256xf32>
    %130 = vector.shape_cast %11 : vector<8x1xi1> to vector<8x1xi1>
    %131 = vector.broadcast %130 : vector<8x1xi1> to vector<8x256xi1>
    %132 = arith.select %131, %126, %129 : vector<8x256xi1>, vector<8x256xf32>
    %cst_3 = arith.constant dense<0.000000e+00> : vector<8xf32>
    %133 = vector.multi_reduction <add>, %2, %cst_3 [1] : vector<8x256xf32> to vector<8xf32>
    %134 = vector.shape_cast %133 : vector<8xf32> to vector<8x1xf32>
    %cst_4 = arith.constant 3.906250e-03 : f32
    %135 = vector.broadcast %cst_4 : f32 to vector<8x1xf32>
    %136 = arith.mulf %134, %135 : vector<8x1xf32>
    %cst_5 = arith.constant dense<0.000000e+00> : vector<8xf32>
    %137 = vector.multi_reduction <add>, %4, %cst_5 [1] : vector<8x256xf32> to vector<8xf32>
    %138 = vector.shape_cast %137 : vector<8xf32> to vector<8x1xf32>
    %cst_6 = arith.constant 3.906250e-03 : f32
    %139 = vector.broadcast %cst_6 : f32 to vector<8x1xf32>
    %140 = arith.mulf %138, %139 : vector<8x1xf32>
    %cst_7 = arith.constant dense<0.000000e+00> : vector<8xf32>
    %141 = vector.multi_reduction <add>, %6, %cst_7 [1] : vector<8x256xf32> to vector<8xf32>
    %142 = vector.shape_cast %141 : vector<8xf32> to vector<8x1xf32>
    %cst_8 = arith.constant 3.906250e-03 : f32
    %143 = vector.broadcast %cst_8 : f32 to vector<8x1xf32>
    %144 = arith.mulf %142, %143 : vector<8x1xf32>
    %cst_9 = arith.constant dense<0.000000e+00> : vector<8xf32>
    %145 = vector.multi_reduction <add>, %8, %cst_9 [1] : vector<8x256xf32> to vector<8xf32>
    %146 = vector.shape_cast %145 : vector<8xf32> to vector<8x1xf32>
    %cst_10 = arith.constant 3.906250e-03 : f32
    %147 = vector.broadcast %cst_10 : f32 to vector<8x1xf32>
    %148 = arith.mulf %146, %147 : vector<8x1xf32>
    %cst_11 = arith.constant 1.000000e+00 : f32
    %149 = vector.broadcast %cst_11 : f32 to vector<8x1xf32>
    %150 = tpu.concatenate %136, %140, %144, %148, %149 in 1 : vector<8x1xf32>, vector<8x1xf32>, vector<8x1xf32>, vector<8x1xf32>, vector<8x1xf32> -> vector<8x5xf32>
    %151 = vector.broadcast %13 : vector<8x1xf32> to vector<8x5xf32>
    %152 = arith.mulf %150, %151 : vector<8x5xf32>
    %153 = vector.broadcast %15 : vector<8x1xf32> to vector<8x5xf32>
    %154 = arith.mulf %150, %153 : vector<8x5xf32>
    %155 = tpu.concatenate %152, %154 in 1 : vector<8x5xf32>, vector<8x5xf32> -> vector<8x10xf32>
    %c0_12 = arith.constant 0 : index
    %c0_13 = arith.constant 0 : index
    %156 = vector.load %arg1[%c0_12, %c0_13] : memref<88x32xf32, #tpu.memory_space<vmem>>, vector<10x32xf32>
    %cst_14 = arith.constant dense<0.000000e+00> : vector<8x32xf32>
    %157 = tpu.matmul %155, %156, %cst_14 {dimension_numbers = #tpu.dot_dimension_numbers<[1], [0], [0], [1], [0, 0, 1, 1], [], []>} : vector<8x10xf32>, vector<10x32xf32>, vector<8x32xf32> -> vector<8x32xf32>
    %cst_15 = arith.constant 0.000000e+00 : f32
    %158 = vector.broadcast %cst_15 : f32 to vector<8x32xf32>
    %159 = arith.maximumf %157, %158 : vector<8x32xf32>
    %160 = tpu.concatenate %159, %149 in 1 : vector<8x32xf32>, vector<8x1xf32> -> vector<8x33xf32>
    %161 = vector.broadcast %13 : vector<8x1xf32> to vector<8x33xf32>
    %162 = arith.mulf %160, %161 : vector<8x33xf32>
    %163 = vector.broadcast %15 : vector<8x1xf32> to vector<8x33xf32>
    %164 = arith.mulf %160, %163 : vector<8x33xf32>
    %165 = tpu.concatenate %162, %164 in 1 : vector<8x33xf32>, vector<8x33xf32> -> vector<8x66xf32>
    %c16_16 = arith.constant 16 : index
    %c0_17 = arith.constant 0 : index
    %166 = vector.load %arg1[%c16_16, %c0_17] : memref<88x32xf32, #tpu.memory_space<vmem>>, vector<66x32xf32>
    %cst_18 = arith.constant dense<0.000000e+00> : vector<8x32xf32>
    %167 = tpu.matmul %165, %166, %cst_18 {dimension_numbers = #tpu.dot_dimension_numbers<[1], [0], [0], [1], [0, 0, 1, 1], [], []>} : vector<8x66xf32>, vector<66x32xf32>, vector<8x32xf32> -> vector<8x32xf32>
    %168 = arith.mulf %167, %167 : vector<8x32xf32>
    %cst_19 = arith.constant dense<0.000000e+00> : vector<8xf32>
    %169 = vector.multi_reduction <add>, %168, %cst_19 [1] : vector<8x32xf32> to vector<8xf32>
    %170 = vector.shape_cast %169 : vector<8xf32> to vector<8x1xf32>
    %171 = math.sqrt %170 : vector<8x1xf32>
    %cst_20 = arith.constant 9.99999996E-13 : f32
    %172 = vector.broadcast %cst_20 : f32 to vector<8x1xf32>
    %173 = arith.maximumf %171, %172 : vector<8x1xf32>
    %174 = vector.broadcast %173 : vector<8x1xf32> to vector<8x32xf32>
    %175 = arith.divf %167, %174 : vector<8x32xf32>
    "tpu.trace_start"() <{level = 10 : i32, message = "id,jd->ij"}> : () -> ()
    %cst_21 = arith.constant dense<0.000000e+00> : vector<8x8xf32>
    %176 = tpu.matmul %175, %175, %cst_21 {dimension_numbers = #tpu.dot_dimension_numbers<[1], [1], [0], [0], [0, 0, 1, 0], [], []>} : vector<8x32xf32>, vector<8x32xf32>, vector<8x8xf32> -> vector<8x8xf32>
    "tpu.trace_stop"() : () -> ()
    %177 = vector.extract_strided_slice %175 {offsets = [4, 0], sizes = [4, 32], strides = [1, 1]} : vector<8x32xf32> to vector<4x32xf32>
    %178 = vector.extract_strided_slice %175 {offsets = [0, 0], sizes = [4, 32], strides = [1, 1]} : vector<8x32xf32> to vector<4x32xf32>
    %179 = tpu.concatenate %177, %178 in 0 : vector<4x32xf32>, vector<4x32xf32> -> vector<8x32xf32>
    %180 = arith.mulf %175, %179 : vector<8x32xf32>
    %cst_22 = arith.constant dense<0.000000e+00> : vector<8xf32>
    %181 = vector.multi_reduction <add>, %180, %cst_22 [1] : vector<8x32xf32> to vector<8xf32>
    %182 = vector.shape_cast %181 : vector<8xf32> to vector<8x1xf32>
    %183 = vector.broadcast %182 : vector<8x1xf32> to vector<8x8xf32>
    %184 = arith.subf %176, %183 : vector<8x8xf32>
    %cst_23 = arith.constant 2.000000e+00 : f32
    %185 = vector.broadcast %cst_23 : f32 to vector<8x8xf32>
    %186 = arith.mulf %184, %185 : vector<8x8xf32>
    %cst_24 = arith.constant 0.000000e+00 : f32
    %187 = vector.broadcast %cst_24 : f32 to vector<8x120xf32>
    %188 = tpu.concatenate %186, %187 in 1 : vector<8x8xf32>, vector<8x120xf32> -> vector<8x128xf32>
    %189 = tpu.concatenate %54, %93, %132, %188 in 1 : vector<8x256xf32>, vector<8x256xf32>, vector<8x256xf32>, vector<8x128xf32> -> vector<8x896xf32>
    %c0_25 = arith.constant 0 : index
    %c0_26 = arith.constant 0 : index
    %190 = vector.load %arg3[%c0_25, %c0_26] : memref<8x896xf32, #tpu.memory_space<vmem>>, vector<8x896xf32>
    tpu.vector_store %arg3[%c0_25, %c0_26], %189 {strides = array<i32>} : memref<8x896xf32, #tpu.memory_space<vmem>>, vector<8x896xf32>,
    return
  }
}

</mosaic_0001>

<llo_original>
// kernel: moclr_forward.1
$region0: #{moclr_forward.1}
  #allocation0 [shape = 'u32[]', space=smem, size = 0x4, offset = 0x4, fixed_abs, tag = 'smem constant byte address 0x4 - core index']
  #allocation1 [shape = 'u32[144,128]{1,0:T(1,128)}', space=vmem, size = 0x12000, scoped, tag = 'internal scratch']
  %s0 = inlined_call_operand.vmem [shape: f32[4,8,256], index: 0, kind: input, shape index: {}]
  %s1 = inlined_call_operand.vmem [shape: f32[88,32], index: 1, kind: input, shape index: {}]
  %s2 = inlined_call_operand.vmem [shape: f32[32], index: 2, kind: input, shape index: {}]
  %s3 = inlined_call_operand.vmem [shape: f32[8,896], index: 3, kind: output, shape index: {}]
  %s4 = sld [smem:[#allocation0]]
  $region26: #{moclr_forward.1} parent=0
    _
  %s6 = ssub.s32 1, %s4
  %s7 = scalar_select 0, %s6, %s4
  $region1: #{moclr_forward.1} parent=0
    #allocation2 [shape = 'u8[512]{0}', space=smem, size = 0x200, scoped, tag = 'input window, operand 2, single buffered']
    #allocation3 [shape = 's32[1]{0}', space=sflag, size = 0x4, scoped, tag = 'scoped memory for moclr_forward.1']
    %8 = vsyncpa [#allocation3], 0
    // Predicated region
    $region2: #{moclr_forward.1} parent=1 // pred_check
      _
    $region3: #{moclr_forward.1} parent=1 // pred_check_branch
      %10 = sbr.rel (0) target = $region5
    $region4: #{moclr_forward.1} parent=1 // pred_region
      _
    $region5: #{moclr_forward.1} parent=1 // pred_fallthru
      _
    // Predicated region
    $region6: #{moclr_forward.1} parent=1 // pred_check
      _
    $region7: #{moclr_forward.1} parent=1 // pred_check_branch
      %12 = sbr.rel (0) target = $region9
    $region8: #{moclr_forward.1} parent=1 // pred_region
      _
    $region9: #{moclr_forward.1} parent=1 // pred_fallthru
      _
    // Predicated region
    $region10: #{moclr_forward.1} parent=1 // pred_check
      _
    $region11: #{moclr_forward.1} parent=1 // pred_check_branch
      %14 = sbr.rel (0) target = $region13
    $region12: #{moclr_forward.1} parent=1 // pred_region
      %s16 = ssub.s32 16, 16
      %17 = vsyncadd [#allocation3], %s16
      %s19 = sshll.u32 %s2, 4
      %s20 = int_to_ptr.vmem [resolvable:$true] %s19
      %22 = dma.vmem_to_smem %s20, 16, [#allocation2], [#allocation3]
    $region13: #{moclr_forward.1} parent=1 // pred_fallthru
      _
    // Predicated region
    $region14: #{moclr_forward.1} parent=1 // pred_check
      _
    $region15: #{moclr_forward.1} parent=1 // pred_check_branch
      %24 = sbr.rel (0) target = $region17
    $region16: #{moclr_forward.1} parent=1 // pred_region
      %25 = dma.done [#allocation3], 16
    $region17: #{moclr_forward.1} parent=1 // pred_fallthru
      _
    %26 = sfence
    %v27 = vld [vmem:[%s0] sm:$0xff]
    %v28 = vld [vmem:[%s0 + $0x8] sm:$0xff]
    %v29 = vld [vmem:[%s0 + $0x10] sm:$0xff]
    %v30 = vld [vmem:[%s0 + $0x18] sm:$0xff]
    %v31 = vld [vmem:[%s0 + $0x20] sm:$0xff]
    %v32 = vld [vmem:[%s0 + $0x28] sm:$0xff]
    %v33 = vld [vmem:[%s0 + $0x30] sm:$0xff]
    %v34 = vld [vmem:[%s0 + $0x38] sm:$0xff]
    %v35 = vlaneseq
    %v36 = vshrl.u32 %v35, 7
    %vm37 = vcmp.lt.s32.totalorder %v36, 4
    %v38 = vsel %vm37, 1, 0
    %v39 = vcvt.s32.f32 %v38
    %v40 = vsub.f32 1.0, %v39
    %s41 = sld [smem:[#allocation2]]
    %v42 = vstv %s41
    %v43 = vmul.f32 %v42, %v27
    %v44 = vmul.f32 %v42, %v28
    %s45 = sld [smem:[#allocation2 + $0xc]]
    %v46 = vstv %s45
    %v47 = vmul.f32 %v46, %v27
    %v48 = vmul.f32 %v46, %v28
    %s49 = sld [smem:[#allocation2 + $0x1]]
    %v50 = vstv %s49
    %v51 = vmul.f32 %v50, %v29
    %v52 = vmul.f32 %v50, %v30
    %v53 = vadd.f32 %v43, %v51
    %v54 = vadd.f32 %v44, %v52
    %s55 = sld [smem:[#allocation2 + $0xd]]
    %v56 = vstv %s55
    %v57 = vmul.f32 %v56, %v29
    %v58 = vmul.f32 %v56, %v30
    %v59 = vadd.f32 %v47, %v57
    %v60 = vadd.f32 %v48, %v58
    %s61 = sld [smem:[#allocation2 + $0x2]]
    %v62 = vstv %s61
    %v63 = vmul.f32 %v62, %v31
    %v64 = vmul.f32 %v62, %v32
    %v65 = vadd.f32 %v53, %v63
    %v66 = vadd.f32 %v54, %v64
    %s67 = sld [smem:[#allocation2 + $0xe]]
    %v68 = vstv %s67
    %v69 = vmul.f32 %v68, %v31
    %v70 = vmul.f32 %v68, %v32
    %v71 = vadd.f32 %v59, %v69
    %v72 = vadd.f32 %v60, %v70
    %s73 = sld [smem:[#allocation2 + $0x3]]
    %v74 = vstv %s73
    %v75 = vmul.f32 %v74, %v33
    %v76 = vmul.f32 %v74, %v34
    %v77 = vadd.f32 %v65, %v75
    %v78 = vadd.f32 %v66, %v76
    %s79 = sld [smem:[#allocation2 + $0xf]]
    %v80 = vstv %s79
    %v81 = vmul.f32 %v80, %v33
    %v82 = vmul.f32 %v80, %v34
    %v83 = vadd.f32 %v71, %v81
    %v84 = vadd.f32 %v72, %v82
    %s85 = sld [smem:[#allocation2 + $0x18]]
    %v86 = vstv %s85
    %v87 = vadd.f32 %v77, %v86
    %v88 = vadd.f32 %v78, %v86
    %s89 = sld [smem:[#allocation2 + $0x1b]]
    %v90 = vstv %s89
    %v91 = vadd.f32 %v83, %v90
    %v92 = vadd.f32 %v84, %v90
    %vm93 = vcmp.eq.s32.totalorder %v38, 1
    %v94 = vsel %vm93, %v87, %v91
    %v95 = vsel %vm93, %v88, %v92
    %s96 = sld [smem:[#allocation2 + $0x4]]
    %v97 = vstv %s96
    %v98 = vmul.f32 %v97, %v27
    %v99 = vmul.f32 %v97, %v28
    %s100 = sld [smem:[#allocation2 + $0x10]]
    %v101 = vstv %s100
    %v102 = vmul.f32 %v101, %v27
    %v103 = vmul.f32 %v101, %v28
    %s104 = sld [smem:[#allocation2 + $0x5]]
    %v105 = vstv %s104
    %v106 = vmul.f32 %v105, %v29
    %v107 = vmul.f32 %v105, %v30
    %v108 = vadd.f32 %v98, %v106
    %v109 = vadd.f32 %v99, %v107
    %s110 = sld [smem:[#allocation2 + $0x11]]
    %v111 = vstv %s110
    %v112 = vmul.f32 %v111, %v29
    %v113 = vmul.f32 %v111, %v30
    %v114 = vadd.f32 %v102, %v112
    %v115 = vadd.f32 %v103, %v113
    %s116 = sld [smem:[#allocation2 + $0x6]]
    %v117 = vstv %s116
    %v118 = vmul.f32 %v117, %v31
    %v119 = vmul.f32 %v117, %v32
    %v120 = vadd.f32 %v108, %v118
    %v121 = vadd.f32 %v109, %v119
    %s122 = sld [smem:[#allocation2 + $0x12]]
    %v123 = vstv %s122
    %v124 = vmul.f32 %v123, %v31
    %v125 = vmul.f32 %v123, %v32
    %v126 = vadd.f32 %v114, %v124
    %v127 = vadd.f32 %v115, %v125
    %s128 = sld [smem:[#allocation2 + $0x7]]
    %v129 = vstv %s128
    %v130 = vmul.f32 %v129, %v33
    %v131 = vmul.f32 %v129, %v34
    %v132 = vadd.f32 %v120, %v130
    %v133 = vadd.f32 %v121, %v131
    %s134 = sld [smem:[#allocation2 + $0x13]]
    %v135 = vstv %s134
    %v136 = vmul.f32 %v135, %v33
    %v137 = vmul.f32 %v135, %v34
    %v138 = vadd.f32 %v126, %v136
    %v139 = vadd.f32 %v127, %v137
    %s140 = sld [smem:[#allocation2 + $0x19]]
    %v141 = vstv %s140
    %v142 = vadd.f32 %v132, %v141
    %v143 = vadd.f32 %v133, %v141
    %s144 = sld [smem:[#allocation2 + $0x1c]]
    %v145 = vstv %s144
    %v146 = vadd.f32 %v138, %v145
    %v147 = vadd.f32 %v139, %v145
    %v148 = vsel %vm93, %v142, %v146
    %v149 = vsel %vm93, %v143, %v147
    %s150 = sld [smem:[#allocation2 + $0x8]]
    %v151 = vstv %s150
    %v152 = vmul.f32 %v151, %v27
    %v153 = vmul.f32 %v151, %v28
    %s154 = sld [smem:[#allocation2 + $0x14]]
    %v155 = vstv %s154
    %v156 = vmul.f32 %v155, %v27
    %v157 = vmul.f32 %v155, %v28
    %s158 = sld [smem:[#allocation2 + $0x9]]
    %v159 = vstv %s158
    %v160 = vmul.f32 %v159, %v29
    %v161 = vmul.f32 %v159, %v30
    %v162 = vadd.f32 %v152, %v160
    %v163 = vadd.f32 %v153, %v161
    %s164 = sld [smem:[#allocation2 + $0x15]]
    %v165 = vstv %s164
    %v166 = vmul.f32 %v165, %v29
    %v167 = vmul.f32 %v165, %v30
    %v168 = vadd.f32 %v156, %v166
    %v169 = vadd.f32 %v157, %v167
    %s170 = sld [smem:[#allocation2 + $0xa]]
    %v171 = vstv %s170
    %v172 = vmul.f32 %v171, %v31
    %v173 = vmul.f32 %v171, %v32
    %v174 = vadd.f32 %v162, %v172
    %v175 = vadd.f32 %v163, %v173
    %s176 = sld [smem:[#allocation2 + $0x16]]
    %v177 = vstv %s176
    %v178 = vmul.f32 %v177, %v31
    %v179 = vmul.f32 %v177, %v32
    %v180 = vadd.f32 %v168, %v178
    %v181 = vadd.f32 %v169, %v179
    %s182 = sld [smem:[#allocation2 + $0xb]]
    %v183 = vstv %s182
    %v184 = vmul.f32 %v183, %v33
    %v185 = vmul.f32 %v183, %v34
    %v186 = vadd.f32 %v174, %v184
    %v187 = vadd.f32 %v175, %v185
    %s188 = sld [smem:[#allocation2 + $0x17]]
    %v189 = vstv %s188
    %v190 = vmul.f32 %v189, %v33
    %v191 = vmul.f32 %v189, %v34
    %v192 = vadd.f32 %v180, %v190
    %v193 = vadd.f32 %v181, %v191
    %s194 = sld [smem:[#allocation2 + $0x1a]]
    %v195 = vstv %s194
    %v196 = vadd.f32 %v186, %v195
    %v197 = vadd.f32 %v187, %v195
    %s198 = sld [smem:[#allocation2 + $0x1d]]
    %v199 = vstv %s198
    %v200 = vadd.f32 %v192, %v199
    %v201 = vadd.f32 %v193, %v199
    %v202 = vsel %vm93, %v196, %v200
    %v203 = vsel %vm93, %v197, %v201
    %v204 = vadd.f32 %v27, %v28
    %205 = vadd.xlane.f32.xlu0 %v204
    %v206 = vpop.xlane.xlu0 %205
    %v207 = vmul.f32 %v206, 0.00390625
    %v208 = vadd.f32 %v29, %v30
    %209 = vadd.xlane.f32.xlu0 %v208
    %v210 = vpop.xlane.xlu0 %209
    %v211 = vmul.f32 %v210, 0.00390625
    %v212 = vadd.f32 %v31, %v32
    %213 = vadd.xlane.f32.xlu0 %v212
    %v214 = vpop.xlane.xlu0 %213
    %v215 = vmul.f32 %v214, 0.00390625
    %v216 = vadd.f32 %v33, %v34
    %217 = vadd.xlane.f32.xlu0 %v216
    %v218 = vpop.xlane.xlu0 %217
    %v219 = vmul.f32 %v218, 0.00390625
    %vm220 = vcmask 7168
    %v221 = vsel %vm220, %v207, %v211
    %vm222 = vcmask 15360
    %v223 = vsel %vm222, %v221, %v215
    %vm224 = vcmask 23552
    %v225 = vsel %vm224, %v223, %v219
    %vm226 = vcmask 31744
    %v227 = vsel %vm226, %v225, 1.0
    %v228 = vmul.f32 %v227, %v39
    %v229 = vmul.f32 %v227, %v40
    %231 = vrot.lane.b32.xlu0 %v229, 5
    %v232 = vpop.permute.xlu0 %231
    %vm234 = vcmask 39936
    %v235 = vsel %vm234, %v228, %v232
    %v236 = vld [vmem:[%s1] sm:$0xff]
    %v237 = vld [vmem:[%s1 + $0x8] sm:$0x3]
    %vm238 = vcmask 80896
    %v240 = vsel %vm238, %v235, 0
    %vm242 = vcmask 1041408
    %v244 = vsel %vm242, %v237, 0
    %246 = vmatprep.subr.mxu0 0.0
    %247 = vmatpush1.msra.mxu0 %v236
    %248 = vmatprep.subr.mxu0 0.0
    %249 = vmatpush1.msra.mxu0 %v244
    %250 = vmatprep.subr.mxu0 0.0
    %251 = vmatpush1.msra.mxu0 0.0
    %252 = vmatprep.subr.mxu0 0.0
    %253 = vmatpush1.msra.mxu0 0.0
    %254 = vmatprep.subr.mxu0 0.0
    %255 = vmatpush1.msra.mxu0 0.0
    %256 = vmatprep.subr.mxu0 0.0
    %257 = vmatpush1.msra.mxu0 0.0
    %258 = vmatprep.subr.mxu0 0.0
    %259 = vmatpush1.msra.mxu0 0.0
    %260 = vmatprep.subr.mxu0 0.0
    %261 = vmatpush1.msra.mxu0 0.0
    %262 = vmatprep.subr.mxu0 0.0
    %263 = vmatpush1.msra.mxu0 0.0
    %264 = vmatprep.subr.mxu0 0.0
    %265 = vmatpush1.msra.mxu0 0.0
    %266 = vmatprep.subr.mxu0 0.0
    %267 = vmatpush1.msra.mxu0 0.0
    %268 = vmatprep.subr.mxu0 0.0
    %269 = vmatpush1.msra.mxu0 0.0
    %270 = vmatprep.subr.mxu0 0.0
    %271 = vmatpush1.msra.mxu0 0.0
    %272 = vmatprep.subr.mxu0 0.0
    %273 = vmatpush1.msra.mxu0 0.0
    %274 = vmatprep.subr.mxu0 0.0
    %275 = vmatpush1.msra.mxu0 0.0
    %276 = vmatprep.subr.mxu0 0.0
    %277 = vmatpush1.msra.mxu0 0.0
    %278 = vmatprep.subr.mxu0 0.0
    %279 = vmatpush1.msra.mxu0 0.0
    %280 = vmatprep.subr.mxu0 0.0
    %281 = vmatpush1.msra.mxu0 0.0
    %282 = vmatprep.subr.mxu0 0.0
    %283 = vmatpush1.msra.mxu0 0.0
    %284 = vmatprep.subr.mxu0 0.0
    %285 = vmatpush1.msra.mxu0 0.0
    %286 = vmatprep.subr.mxu0 0.0
    %287 = vmatpush1.msra.mxu0 0.0
    %288 = vmatprep.subr.mxu0 0.0
    %289 = vmatpush1.msra.mxu0 0.0
    %290 = vmatprep.subr.mxu0 0.0
    %291 = vmatpush1.msra.mxu0 0.0
    %292 = vmatprep.subr.mxu0 0.0
    %293 = vmatpush1.msra.mxu0 0.0
    %294 = vmatprep.subr.mxu0 0.0
    %295 = vmatpush1.msra.mxu0 0.0
    %296 = vmatprep.subr.mxu0 0.0
    %297 = vmatpush1.msra.mxu0 0.0
    %298 = vmatprep.subr.mxu0 0.0
    %299 = vmatpush1.msra.mxu0 0.0
    %300 = vmatprep.subr.mxu0 0.0
    %301 = vmatpush1.msra.mxu0 0.0
    %302 = vmatprep.subr.mxu0 0.0
    %303 = vmatpush1.msra.mxu0 0.0
    %304 = vmatprep.subr.mxu0 0.0
    %305 = vmatpush1.msra.mxu0 0.0
    %306 = vmatprep.subr.mxu0 0.0
    %307 = vmatpush1.msra.mxu0 0.0
    %308 = vmatprep.subr.mxu0 0.0
    %309 = vmatpush1.msra.mxu0 0.0
    %310 = vmatprep.mubr.f32.mxu0 0.0
    %311 = vmatmul.mubr.f32.gmra.mrb[0].mxu0 %v240
    %v312 = vpop.f32.mrb[0].mxu0
    %v313 = vadd.f32 0.0, %v312
    %v314 = vpop.f32.mrb[0].mxu0
    %315 = vdwg.mxu0
    %v316 = vmax.f32 %v313, 0.0
    %vm317 = vcmask 261120
    %v318 = vsel %vm317, %v316, 1.0
    %v319 = vmul.f32 %v318, %v39
    %v320 = vmul.f32 %v318, %v40
    %322 = vrot.lane.b32.xlu0 %v320, 33
    %v323 = vpop.permute.xlu0 %322
    %vm325 = vcmask 269312
    %v326 = vsel %vm325, %v319, %v323
    %v327 = vld [vmem:[%s1 + $0x10] sm:$0xff]
    %v328 = vld [vmem:[%s1 + $0x18] sm:$0xff]
    %v329 = vld [vmem:[%s1 + $0x20] sm:$0xff]
    %v330 = vld [vmem:[%s1 + $0x28] sm:$0xff]
    %v331 = vld [vmem:[%s1 + $0x30] sm:$0xff]
    %v332 = vld [vmem:[%s1 + $0x38] sm:$0xff]
    %v333 = vld [vmem:[%s1 + $0x40] sm:$0xff]
    %v334 = vld [vmem:[%s1 + $0x48] sm:$0xff]
    %v335 = vld [vmem:[%s1 + $0x50] sm:$0x3]
    %vm336 = vcmask 539648
    %v338 = vsel %vm336, %v326, 0
    %v341 = vsel %vm242, %v335, 0
    %343 = vmatprep.subr.mxu0 0.0
    %344 = vmatpush1.msra.mxu0 %v327
    %345 = vmatprep.subr.mxu0 0.0
    %346 = vmatpush1.msra.mxu0 %v328
    %347 = vmatprep.subr.mxu0 0.0
    %348 = vmatpush1.msra.mxu0 %v329
    %349 = vmatprep.subr.mxu0 0.0
    %350 = vmatpush1.msra.mxu0 %v330
    %351 = vmatprep.subr.mxu0 0.0
    %352 = vmatpush1.msra.mxu0 %v331
    %353 = vmatprep.subr.mxu0 0.0
    %354 = vmatpush1.msra.mxu0 %v332
    %355 = vmatprep.subr.mxu0 0.0
    %356 = vmatpush1.msra.mxu0 %v333
    %357 = vmatprep.subr.mxu0 0.0
    %358 = vmatpush1.msra.mxu0 %v334
    %359 = vmatprep.subr.mxu0 0.0
    %360 = vmatpush1.msra.mxu0 %v341
    %361 = vmatprep.subr.mxu0 0.0
    %362 = vmatpush1.msra.mxu0 0.0
    %363 = vmatprep.subr.mxu0 0.0
    %364 = vmatpush1.msra.mxu0 0.0
    %365 = vmatprep.subr.mxu0 0.0
    %366 = vmatpush1.msra.mxu0 0.0
    %367 = vmatprep.subr.mxu0 0.0
    %368 = vmatpush1.msra.mxu0 0.0
    %369 = vmatprep.subr.mxu0 0.0
    %370 = vmatpush1.msra.mxu0 0.0
    %371 = vmatprep.subr.mxu0 0.0
    %372 = vmatpush1.msra.mxu0 0.0
    %373 = vmatprep.subr.mxu0 0.0
    %374 = vmatpush1.msra.mxu0 0.0
    %375 = vmatprep.subr.mxu0 0.0
    %376 = vmatpush1.msra.mxu0 0.0
    %377 = vmatprep.subr.mxu0 0.0
    %378 = vmatpush1.msra.mxu0 0.0
    %379 = vmatprep.subr.mxu0 0.0
    %380 = vmatpush1.msra.mxu0 0.0
    %381 = vmatprep.subr.mxu0 0.0
    %382 = vmatpush1.msra.mxu0 0.0
    %383 = vmatprep.subr.mxu0 0.0
    %384 = vmatpush1.msra.mxu0 0.0
    %385 = vmatprep.subr.mxu0 0.0
    %386 = vmatpush1.msra.mxu0 0.0
    %387 = vmatprep.subr.mxu0 0.0
    %388 = vmatpush1.msra.mxu0 0.0
    %389 = vmatprep.subr.mxu0 0.0
    %390 = vmatpush1.msra.mxu0 0.0
    %391 = vmatprep.subr.mxu0 0.0
    %392 = vmatpush1.msra.mxu0 0.0
    %393 = vmatprep.subr.mxu0 0.0
    %394 = vmatpush1.msra.mxu0 0.0
    %395 = vmatprep.subr.mxu0 0.0
    %396 = vmatpush1.msra.mxu0 0.0
    %397 = vmatprep.subr.mxu0 0.0
    %398 = vmatpush1.msra.mxu0 0.0
    %399 = vmatprep.subr.mxu0 0.0
    %400 = vmatpush1.msra.mxu0 0.0
    %401 = vmatprep.subr.mxu0 0.0
    %402 = vmatpush1.msra.mxu0 0.0
    %403 = vmatprep.subr.mxu0 0.0
    %404 = vmatpush1.msra.mxu0 0.0
    %405 = vmatprep.subr.mxu0 0.0
    %406 = vmatpush1.msra.mxu0 0.0
    %407 = vmatprep.mubr.f32.mxu0 0.0
    %408 = vmatmul.mubr.f32.gmra.mrb[0].mxu0 %v338
    %v409 = vpop.f32.mrb[0].mxu0
    %v410 = vadd.f32 0.0, %v409
    %v411 = vpop.f32.mrb[0].mxu0
    %412 = vdwg.mxu0
    %v413 = vmul.f32 %v410, %v410
    %v414 = vsel %vm317, %v413, 0.0
    %415 = vadd.xlane.f32.xlu0 %v414
    %v416 = vpop.xlane.xlu0 %415
    %v417 = vrsqrt.pop %v416
    %v418 = vmul.f32 %v416, %v417
    %vm419 = vcmp.eq.f32.partialorder %v416, inf
    %v420 = vsel %vm419, %v416, %v418
    %vm421 = vcmp.eq.f32.partialorder %v416, 0.0
    %v422 = vand.u32 %v416, 2147483648
    %v423 = vsel %vm421, %v422, %v420
    %v424 = vmax.f32 %v423, 1e-12
    %v425 = vrcp.pop %v424
    %v426 = vmul.f32 %v410, %v425
    %v428 = vsel %vm317, %v426, 0
    %430 = vmatprep.subr.mxu0 0.0
    %431 = vmatpush1.xpose.msra.mxu0 %v428
    %432 = vmatprep.subr.mxu0 0.0
    %433 = vmatpush1.xpose.msra.mxu0 0.0
    %434 = vmatprep.subr.mxu0 0.0
    %435 = vmatpush1.xpose.msra.mxu0 0.0
    %436 = vmatprep.subr.mxu0 0.0
    %437 = vmatpush1.xpose.msra.mxu0 0.0
    %438 = vmatprep.subr.mxu0 0.0
    %439 = vmatpush1.xpose.msra.mxu0 0.0
    %440 = vmatprep.subr.mxu0 0.0
    %441 = vmatpush1.xpose.msra.mxu0 0.0
    %442 = vmatprep.subr.mxu0 0.0
    %443 = vmatpush1.xpose.msra.mxu0 0.0
    %444 = vmatprep.subr.mxu0 0.0
    %445 = vmatpush1.xpose.msra.mxu0 0.0
    %446 = vmatprep.subr.mxu0 0.0
    %447 = vmatpush1.xpose.msra.mxu0 0.0
    %448 = vmatprep.subr.mxu0 0.0
    %449 = vmatpush1.xpose.msra.mxu0 0.0
    %450 = vmatprep.subr.mxu0 0.0
    %451 = vmatpush1.xpose.msra.mxu0 0.0
    %452 = vmatprep.subr.mxu0 0.0
    %453 = vmatpush1.xpose.msra.mxu0 0.0
    %454 = vmatprep.subr.mxu0 0.0
    %455 = vmatpush1.xpose.msra.mxu0 0.0
    %456 = vmatprep.subr.mxu0 0.0
    %457 = vmatpush1.xpose.msra.mxu0 0.0
    %458 = vmatprep.subr.mxu0 0.0
    %459 = vmatpush1.xpose.msra.mxu0 0.0
    %460 = vmatprep.subr.mxu0 0.0
    %461 = vmatpush1.xpose.msra.mxu0 0.0
    %462 = vmatprep.subr.mxu0 0.0
    %463 = vmatpush1.xpose.msra.mxu0 0.0
    %464 = vmatprep.subr.mxu0 0.0
    %465 = vmatpush1.xpose.msra.mxu0 0.0
    %466 = vmatprep.subr.mxu0 0.0
    %467 = vmatpush1.xpose.msra.mxu0 0.0
    %468 = vmatprep.subr.mxu0 0.0
    %469 = vmatpush1.xpose.msra.mxu0 0.0
    %470 = vmatprep.subr.mxu0 0.0
    %471 = vmatpush1.xpose.msra.mxu0 0.0
    %472 = vmatprep.subr.mxu0 0.0
    %473 = vmatpush1.xpose.msra.mxu0 0.0
    %474 = vmatprep.subr.mxu0 0.0
    %475 = vmatpush1.xpose.msra.mxu0 0.0
    %476 = vmatprep.subr.mxu0 0.0
    %477 = vmatpush1.xpose.msra.mxu0 0.0
    %478 = vmatprep.subr.mxu0 0.0
    %479 = vmatpush1.xpose.msra.mxu0 0.0
    %480 = vmatprep.subr.mxu0 0.0
    %481 = vmatpush1.xpose.msra.mxu0 0.0
    %482 = vmatprep.subr.mxu0 0.0
    %483 = vmatpush1.xpose.msra.mxu0 0.0
    %484 = vmatprep.subr.mxu0 0.0
    %485 = vmatpush1.xpose.msra.mxu0 0.0
    %486 = vmatprep.subr.mxu0 0.0
    %487 = vmatpush1.xpose.msra.mxu0 0.0
    %488 = vmatprep.subr.mxu0 0.0
    %489 = vmatpush1.xpose.msra.mxu0 0.0
    %490 = vmatprep.subr.mxu0 0.0
    %491 = vmatpush1.xpose.msra.mxu0 0.0
    %492 = vmatprep.subr.mxu0 0.0
    %493 = vmatpush1.xpose.msra.mxu0 0.0
    %494 = vmatprep.mubr.f32.mxu0 0.0
    %495 = vmatmul.mubr.f32.gmra.mrb[0].mxu0 %v428
    %v496 = vpop.f32.mrb[0].mxu0
    %v497 = vadd.f32 0.0, %v496
    %v498 = vpop.f32.mrb[0].mxu0
    %499 = vdwg.mxu0
    %v500 = vrot.slane %v426, 4
    %vm502 = vcmask 1043456
    %v503 = vsel %vm502, %v500, %v500
    %v504 = vmul.f32 %v426, %v503
    %v505 = vsel %vm317, %v504, 0.0
    %506 = vadd.xlane.f32.xlu0 %v505
    %v507 = vpop.xlane.xlu0 %506
    %v508 = vsub.f32 %v497, %v507
    %v509 = vmul.f32 %v508, 2.0
    %vm510 = vcmask 64512
    %v511 = vsel %vm510, %v509, 0.0
    %512 = vst [vmem:[%s3] sm:$0xff] %v94
    %513 = vst [vmem:[%s3 + $0x8] sm:$0xff] %v95
    %514 = vst [vmem:[%s3 + $0x10] sm:$0xff] %v148
    %515 = vst [vmem:[%s3 + $0x18] sm:$0xff] %v149
    %516 = vst [vmem:[%s3 + $0x20] sm:$0xff] %v202
    %517 = vst [vmem:[%s3 + $0x28] sm:$0xff] %v203
    %518 = vst [vmem:[%s3 + $0x30] sm:$0xff] %v511
    // Predicated region
    $region18: #{moclr_forward.1} parent=1 // pred_check
      _
    $region19: #{moclr_forward.1} parent=1 // pred_check_branch
      %520 = sbr.rel (0) target = $region21
    $region20: #{moclr_forward.1} parent=1 // pred_region
      _
    $region21: #{moclr_forward.1} parent=1 // pred_fallthru
      _
    // Predicated region
    $region22: #{moclr_forward.1} parent=1 // pred_check
      _
    $region23: #{moclr_forward.1} parent=1 // pred_check_branch
      %522 = sbr.rel (0) target = $region25
    $region24: #{moclr_forward.1} parent=1 // pred_region
      _
    $region25: #{moclr_forward.1} parent=1 // pred_fallthru
      _
    %523 = vsyncpa [#allocation3], 1

</llo_original>
